<compile_context>
chip_gen: v5e
topology: v5e:2x2
jax: 0.10.0
libtpu: 0.0.40
codegen_flags: <defaults>
</compile_context>

<pallas_src>
import jax
import jax.numpy as jnp
from jax.experimental import pallas as pl
from jax.experimental.pallas import tpu as pltpu


def _spatial_attn_kernel(p_ref, x_ref, o_ref):
    # p_ref : SMEM (3,) f32          -> fused scalars [a, b', c]  (b' = b / C)
    # x_ref : VMEM (N_TILE, C, L_TILE)
    # o_ref : VMEM (N_TILE, C, L_TILE)
    x = x_ref[...]

    # Channel reduction over the sublane axis.  The sum accumulates in f32 so
    # bf16 inputs stay accurate, but the full (C, L_TILE) tile is never upcast
    # (halves vreg/VMEM traffic for bf16 on v6e/v7x; f32 inputs are unchanged).
    sum_c = jnp.sum(x, axis=1, keepdims=True, dtype=jnp.float32)    # (nt, 1, lt)
    max_c = jnp.max(x, axis=1, keepdims=True).astype(jnp.float32)   # (nt, 1, lt)

    # Fused conv1d(k=1, no bias) + eval-mode BatchNorm affine on the reduced row.
    s = p_ref[0] * max_c + p_ref[1] * sum_c + p_ref[2]
    s = jnp.maximum(s, 0.0)            # ReLU
    s = jax.nn.sigmoid(s)              # Sigmoid (EUP)

    # Broadcast over the channel axis; multiply in the input dtype.
    o_ref[...] = (s.astype(x.dtype) * x).astype(o_ref.dtype)


def _vmem_plan():
    """Per-generation VMEM limit + tile-sizing budget, derived from the chip.

    v5e/v6e (128 MiB physical)  -> limit ~90 MiB; v7x (64 MiB per TC) -> ~45 MiB.
    The sizing budget is kept at 80% of the limit so the two knobs stay consistent.
    """
    try:
        cap = pltpu.get_tpu_info().vmem_capacity_bytes
    except Exception:
        cap = 64 * 1024 * 1024          # conservative fallback (v7x per-TC VMEM)
    limit = min(int(cap * 0.70), 100 * 1024 * 1024)
    limit = max(limit, 32 * 1024 * 1024)
    budget = int(limit * 0.80)
    return limit, budget


def _plan_tiling(N, C, L_pad, itemsize, budget_bytes):
    """Pick (n_tile, l_tile): lane-dense blocks sized by bytes (~4 MiB target),
    keeping >= 2 grid steps (v7x's two TensorCores) and ideally >= 8."""
    c_pad = ((C + 7) // 8) * 8                 # sublane padding of the channel axis
    row_bytes = c_pad * itemsize               # bytes per (batch=1, lane=1) column
    # Live blocks: x input (up to 3 buffers) + output (2 buffers) -> 5 blocks.
    max_block_bytes = max(row_bytes * 128, budget_bytes // 5)
    target = min(4 * 1024 * 1024, max_block_bytes)

    q = L_pad // 128
    l_divs = sorted(d * 128 for d in range(1, q + 1) if q % d == 0)
    n_divs = sorted(d for d in range(1, N + 1) if N % d == 0)

    def nbytes(n_t, l_t):
        return n_t * l_t * row_bytes

    l_tile = 128
    for l in l_divs:                           # grow the lane axis first (contiguous DMA)
        if nbytes(1, l) <= target:
            l_tile = l
    n_tile = 1
    for n in n_divs:                           # then grow the batch axis
        if nbytes(n, l_tile) <= target:
            n_tile = n

    def steps(n_t, l_t):
        return (N // n_t) * (L_pad // l_t)

    max_steps = steps(1, 128)

    def shrink_once():
        nonlocal n_tile, l_tile
        if n_tile > 1:
            n_tile = max(d for d in n_divs if d < n_tile)
            return True
        if l_tile > 128:
            l_tile = max(d for d in l_divs if d < l_tile)
            return True
        return False

    # Soft: aim for >= 8 steps while blocks stay comfortably large (>= 2 MiB).
    while (steps(n_tile, l_tile) < min(8, max_steps)
           and nbytes(n_tile, l_tile) >= 2 * 1024 * 1024):
        if not shrink_once():
            break
    # Hard: >= 2 steps whenever the problem allows it (keep both v7x TCs busy).
    while steps(n_tile, l_tile) < min(2, max_steps):
        if not shrink_once():
            break
    return n_tile, l_tile


def spatial_attention(x, conv_w, bn_params, *, eps=1e-5):
    """x: (N, C, L); conv_w: (2,) [w_max, w_mean]; bn_params: (4,)
    [gamma, beta, running_mean, running_var]  ->  (N, C, L).  Eval-mode BN."""
    N, C, L = x.shape

    # Fold conv1d(k=1, no bias) + eval-mode BN into 3 scalars: s = a*max + b'*sum + c,
    # with 1/C folded into b' so the kernel runs a sum (no per-lane divide).
    gamma, beta, r_mean, r_var = (bn_params[0], bn_params[1],
                                  bn_params[2], bn_params[3])
    scale = gamma * jax.lax.rsqrt(r_var.astype(jnp.float32) + eps)
    fused = jnp.stack([scale * conv_w[0],
                       scale * conv_w[1] / C,
                       beta - scale * r_mean]).astype(jnp.float32)

    # Lane-dense layout: pad L up to a multiple of 128 (the reduction runs over C,
    # not L, so padding never contaminates valid outputs) and slice the pad off
    # afterwards.  This keeps every output store an unmasked full-lane vst.
    L_pad = ((L + 127) // 128) * 128
    x_in = x if L_pad == L else jnp.pad(x, ((0, 0), (0, 0), (0, L_pad - L)))

    vmem_limit, vmem_budget = _vmem_plan()
    n_tile, l_tile = _plan_tiling(N, C, L_pad, x.dtype.itemsize, vmem_budget)
    grid = (N // n_tile, L_pad // l_tile)
    n_steps = grid[0] * grid[1]

    idx = lambda n, l: (n, 0, l)
    if n_steps >= 4:
        # Per-block compute is near-zero; a third input buffer hides DMA issue latency.
        x_spec = pl.BlockSpec((n_tile, C, l_tile), idx, pipeline_mode=pl.Buffered(3))
    else:
        x_spec = pl.BlockSpec((n_tile, C, l_tile), idx)

    out = pl.pallas_call(
        _spatial_attn_kernel,
        out_shape=jax.ShapeDtypeStruct((N, C, L_pad), x.dtype),
        grid=grid,
        in_specs=[
            pl.BlockSpec(memory_space=pltpu.MemorySpace.SMEM),   # fused scalars
            x_spec,                                              # x tile (full C resident)
        ],
        out_specs=pl.BlockSpec((n_tile, C, l_tile), idx),
        compiler_params=pltpu.CompilerParams(
            # Every (n, l) block is independent -> both axes parallel so v7x's two
            # TensorCores (and megacore on v6e) both get work.
            dimension_semantics=("parallel", "parallel"),
            vmem_limit_bytes=vmem_limit,
        ),
    )(fused, x_in)

    return out if L_pad == L else out[:, :, :L]


def spatial_attention_ref(x, conv_w, bn_params, eps=1e-5):
    """Pure-JAX reference mirroring the PyTorch forward (eval-mode BN)."""
    mean_c = jnp.mean(x, axis=1, keepdims=True)
    max_c = jnp.max(x, axis=1, keepdims=True)
    s = conv_w[0] * max_c + conv_w[1] * mean_c
    gamma, beta, r_mean, r_var = bn_params
    s = (s - r_mean) * (gamma / jnp.sqrt(r_var + eps)) + beta
    s = jnp.maximum(s, 0.0)
    s = jax.nn.sigmoid(s)
    return s * x


if __name__ == "__main__":
    key = jax.random.PRNGKey(0)

    # Deterministic synthetic parameters.
    # Conv1d(in=2, out=1, k=1, bias=False): weight (1,2,1) -> (2,), channel order of
    # cat([max, mean]) is [w_max, w_mean].  BatchNorm1d(1): [gamma, beta, r_mean, r_var].
    conv_w = jnp.array([0.7, -0.3], dtype=jnp.float32)
    bn_params = jnp.array([1.1, 0.05, 0.02, 0.9], dtype=jnp.float32)

    # Case 1: small module-consistent shape (N, C, L) = (2, 4, 16); ragged L is padded
    # to a single lane-dense 128-wide block per batch element.
    N, C, L = 2, 4, 16
    x = jax.random.normal(key, (N, C, L), dtype=jnp.float32)
    out = jax.block_until_ready(spatial_attention(x, conv_w, bn_params))
    ref = spatial_attention_ref(x, conv_w, bn_params)
    assert out.shape == (N, C, L)
    assert jnp.allclose(out, ref, atol=1e-5, rtol=1e-5), "mismatch vs reference (small)"

    # Case 2: lane-dense L with a multi-step grid (exercises the N/L tiling planner).
    x2 = jax.random.normal(jax.random.PRNGKey(1), (4, 8, 512), dtype=jnp.float32)
    out2 = jax.block_until_ready(spatial_attention(x2, conv_w, bn_params))
    ref2 = spatial_attention_ref(x2, conv_w, bn_params)
    assert jnp.allclose(out2, ref2, atol=1e-5, rtol=1e-5), "mismatch vs reference (tiled)"

    # Case 3: larger shape that hits the ~4 MiB block target and the Buffered(3)
    # input pipeline (grid of 8 steps, 4 MiB blocks).
    x3 = jax.random.normal(jax.random.PRNGKey(2), (8, 256, 4096), dtype=jnp.float32)
    out3 = jax.block_until_ready(spatial_attention(x3, conv_w, bn_params))
    ref3 = spatial_attention_ref(x3, conv_w, bn_params)
    assert jnp.allclose(out3, ref3, atol=1e-5, rtol=1e-5), "mismatch vs reference (large)"

    print("KERNEL_OK")
</pallas_src>

<mosaic_0001>
module attributes {stable_mosaic.version = 11 : i64} {
  func.func @_spatial_attn_kernel(%arg0: i32, %arg1: i32, %arg2: memref<3xf32, #tpu.memory_space<smem>>, %arg3: memref<1x4x128xf32, #tpu.memory_space<vmem>>, %arg4: memref<1x4x128xf32, #tpu.memory_space<vmem>>) attributes {dimension_semantics = [#tpu.dimension_semantics<parallel>, #tpu.dimension_semantics<parallel>], iteration_bounds = array<i64: 2, 1>, scalar_prefetch = 0 : i64, scratch_operands = 0 : i64, tpu.core_type = #tpu.core_type<tc>, window_params = [{transform_indices = @transform_0, window_bounds = array<i64: 3>}, {transform_indices = @transform_1, window_bounds = array<i64: 1, 4, 128>}, {transform_indices = @transform_2, window_bounds = array<i64: 1, 4, 128>}]} {
    %c0 = arith.constant 0 : index
    %c0_0 = arith.constant 0 : index
    %c0_1 = arith.constant 0 : index
    %0 = vector.load %arg3[%c0, %c0_0, %c0_1] : memref<1x4x128xf32, #tpu.memory_space<vmem>>, vector<1x4x128xf32>
    %cst = arith.constant dense<0.000000e+00> : vector<1x128xf32>
    %1 = vector.multi_reduction <add>, %0, %cst [1] : vector<1x4x128xf32> to vector<1x128xf32>
    %2 = vector.shape_cast %1 : vector<1x128xf32> to vector<1x1x128xf32>
    %cst_2 = arith.constant dense<0xFF800000> : vector<1x128xf32>
    %3 = vector.multi_reduction <maximumf>, %0, %cst_2 [1] : vector<1x4x128xf32> to vector<1x128xf32>
    %4 = vector.shape_cast %3 : vector<1x128xf32> to vector<1x1x128xf32>
    %c0_3 = arith.constant 0 : index
    %5 = memref.load %arg2[%c0_3] : memref<3xf32, #tpu.memory_space<smem>>
    %6 = vector.broadcast %5 : f32 to vector<1x1x128xf32>
    %7 = arith.mulf %6, %4 : vector<1x1x128xf32>
    %c1 = arith.constant 1 : index
    %8 = memref.load %arg2[%c1] : memref<3xf32, #tpu.memory_space<smem>>
    %9 = vector.broadcast %8 : f32 to vector<1x1x128xf32>
    %10 = arith.mulf %9, %2 : vector<1x1x128xf32>
    %11 = arith.addf %7, %10 : vector<1x1x128xf32>
    %c2 = arith.constant 2 : index
    %12 = memref.load %arg2[%c2] : memref<3xf32, #tpu.memory_space<smem>>
    %13 = vector.broadcast %12 : f32 to vector<1x1x128xf32>
    %14 = arith.addf %11, %13 : vector<1x1x128xf32>
    %cst_4 = arith.constant 0.000000e+00 : f32
    %15 = vector.broadcast %cst_4 : f32 to vector<1x1x128xf32>
    %16 = arith.maximumf %14, %15 : vector<1x1x128xf32>
    %17 = arith.negf %16 : vector<1x1x128xf32>
    %18 = math.exp %17 : vector<1x1x128xf32>
    %cst_5 = arith.constant 1.000000e+00 : f32
    %19 = vector.broadcast %cst_5 : f32 to vector<1x1x128xf32>
    %20 = arith.addf %19, %18 : vector<1x1x128xf32>
    %21 = arith.divf %19, %20 : vector<1x1x128xf32>
    %22 = vector.broadcast %21 : vector<1x1x128xf32> to vector<1x4x128xf32>
    %23 = arith.mulf %22, %0 : vector<1x4x128xf32>
    %c0_6 = arith.constant 0 : index
    %c0_7 = arith.constant 0 : index
    %c0_8 = arith.constant 0 : index
    %24 = vector.load %arg4[%c0_6, %c0_7, %c0_8] : memref<1x4x128xf32, #tpu.memory_space<vmem>>, vector<1x4x128xf32>
    tpu.vector_store %arg4[%c0_6, %c0_7, %c0_8], %23 {strides = array<i32>} : memref<1x4x128xf32, #tpu.memory_space<vmem>>, vector<1x4x128xf32>,
    return
  }
  func.func @transform_0(%arg0: i32, %arg1: i32) -> i32 {
    %c0_i32 = arith.constant 0 : i32
    %c0_i32_0 = arith.constant 0 : i32
    return %c0_i32 : i32
  }
  func.func @transform_1(%arg0: i32, %arg1: i32) -> (i32, i32, i32) {
    %c0_i32 = arith.constant 0 : i32
    %c0_i32_0 = arith.constant 0 : i32
    return %arg0, %c0_i32, %arg1 : i32, i32, i32
  }
  func.func @transform_2(%arg0: i32, %arg1: i32) -> (i32, i32, i32) {
    %c0_i32 = arith.constant 0 : i32
    %c0_i32_0 = arith.constant 0 : i32
    return %arg0, %c0_i32, %arg1 : i32, i32, i32
  }
}

</mosaic_0001>

<llo_original>
// kernel: tpu_custom_call.1
$region0: #{tpu_custom_call.1}
  #allocation0 [shape = 'u32[]', space=smem, size = 0x4, offset = 0x4, fixed_abs, tag = 'smem constant byte address 0x4 - core index']
  #allocation1 [shape = 'u32[72,128]{1,0:T(1,128)}', space=vmem, size = 0x9000, scoped, tag = 'internal scratch']
  %s0 = inlined_call_operand.hbm [shape: f32[3], index: 0, kind: input, shape index: {}]
  %s1 = inlined_call_operand.hbm [shape: f32[2,4,128], index: 1, kind: input, shape index: {}]
  %s2 = inlined_call_operand.hbm [shape: f32[2,4,128], index: 2, kind: output, shape index: {}]
  %s3 = sld [smem:[#allocation0]]
  $region49: #{tpu_custom_call.1} parent=0
    _
  %s5 = ssub.s32 1, %s3
  %s6 = scalar_select 0, %s5, %s3
  $region1: #{tpu_custom_call.1} parent=0
    #allocation2 [shape = 'u8[512]{0}', space=smem, size = 0x200, scoped, tag = 'input window, operand 0, single buffered']
    #allocation3 [shape = 's32[2]{0}', space=sflag, size = 0x8, scoped, tag = 'scoped memory for tpu_custom_call.1']
    #allocation4 [shape = 's32[2]{0}', space=sflag, size = 0x8, scoped, tag = 'scoped memory for tpu_custom_call.1']
    #allocation5 [shape = 's32[2]{0}', space=sflag, size = 0x8, scoped, tag = 'scoped memory for tpu_custom_call.1']
    #allocation6 [shape = 'u8[4096]{0}', space=vmem, size = 0x1000, scoped, tag = 'input window, operand 1']
    #allocation7 [shape = 'u8[4096]{0}', space=vmem, size = 0x1000, scoped, tag = 'output window, operand 0']
    %7 = vsyncpa [#allocation5], 0
    %8 = vsyncpa [#allocation3], 0
    %s9 = scalar_lea.sflag [#allocation3], 1
    %10 = vsyncpa %s9, 0
    %11 = vsyncpa [#allocation4], 0
    %s12 = scalar_lea.sflag [#allocation4], 1
    %13 = vsyncpa %s12, 0
    loop: start=0, step=1, limit=4
    $region2: #{tpu_custom_call.1} parent=1 // loop_pre_header
      _
    $region3: #{tpu_custom_call.1} parent=1 // loop_header
      %s15 = sphi 0, %s19
      %p16 = scmp.ge.s32.totalorder %s15, 4
      %s22 = sphi 0, %s34
      %s23 = sphi 0, %s30
      %s24 = sphi 0, %s22
      %s25 = sphi 0, %s23
      %s26 = sphi 0, %s24
      %s27 = sphi 0, %s25
      %s35 = sphi 0, %s35
      %s37 = sphi 0, %s35
      %s38 = sphi 0, %s37
      %s52 = sphi 0, %s38
      %s60 = sphi 0, %s62
      %s63 = sphi 0, %s60
      %s64 = sphi 0, %s63
      %s80 = sphi 0, %s64
      %s88 = sphi 0, %s90
      %s91 = sphi 0, %s88
      %s92 = sphi 0, %s91
      %s108 = sphi 0, %s92
    $region4: #{tpu_custom_call.1} parent=1 // loop_header_branch
      %18 = sbr.rel (%p16) target = $region8
    $region5: #{tpu_custom_call.1} parent=1 // loop_body
      %s20 = ssub.s32 %s15, 1
      %s21 = ssub.s32 %s15, 2
      %s28 = sadd.s32 1, %s23
      %p29 = scmp.ge.s32.totalorder %s28, 1
      %s30 = scalar_select %p29, 0, %s28
      %s31 = sadd.s32 1, %s22
      %s32 = scalar_select %p29, %s31, %s22
      %p33 = scmp.ge.s32.totalorder %s32, 2
      %s34 = scalar_select %p33, 0, %s32
      %s36 = sadd.s32 %s35, 1
      %p39 = scmp.eq.s32.totalorder %s15, 1
      %p40 = scmp.ne.s32.totalorder %s35, %s37
      %p41 = scmp.eq.s32.totalorder %s15, 0
      %p42 = por %p40, %p41
      %p43 = scmp.ne.s32.totalorder %s35, %s37
      %p44 = scmp.eq.s32.totalorder %s20, 1
      %p45 = por %p43, %p44
      %p46 = scmp.ne.s32.totalorder %s37, %s38
      %p47 = scmp.eq.s32.totalorder %s20, 0
      %p48 = por %p46, %p47
      %p49 = scmp.ne.s32.totalorder %s37, %s38
      %p50 = scmp.eq.s32.totalorder %s21, 1
      %p51 = por %p49, %p50
      %p53 = scmp.ne.s32.totalorder %s38, %s52
      %p54 = scmp.eq.s32.totalorder %s21, 0
      %p55 = por %p53, %p54
      %s56 = ssub.s32 %s22, %s34
      %s57 = ssub.s32 %s23, %s30
      %s58 = sor.u32 %s56, %s57
      %p59 = scmp.eq.s32.totalorder %s58, 0
      %s61 = sadd.s32 %s60, 1
      %s62 = scalar_select %p59, %s60, %s61
      %p65 = pneg %p59
      %p66 = scmp.eq.s32.totalorder %s15, 1
      %p67 = por %p65, %p66
      %p68 = scmp.ne.s32.totalorder %s60, %s63
      %p69 = scmp.eq.s32.totalorder %s15, 0
      %p70 = por %p68, %p69
      %p71 = scmp.ne.s32.totalorder %s60, %s63
      %p72 = scmp.eq.s32.totalorder %s20, 1
      %p73 = por %p71, %p72
      %p74 = scmp.ne.s32.totalorder %s63, %s64
      %p75 = scmp.eq.s32.totalorder %s20, 0
      %p76 = por %p74, %p75
      %p77 = scmp.ne.s32.totalorder %s63, %s64
      %p78 = scmp.eq.s32.totalorder %s21, 1
      %p79 = por %p77, %p78
      %p81 = scmp.ne.s32.totalorder %s64, %s80
      %p82 = scmp.eq.s32.totalorder %s21, 0
      %p83 = por %p81, %p82
      %s84 = ssub.s32 %s22, %s34
      %s85 = ssub.s32 %s23, %s30
      %s86 = sor.u32 %s84, %s85
      %p87 = scmp.eq.s32.totalorder %s86, 0
      %s89 = sadd.s32 %s88, 1
      %s90 = scalar_select %p87, %s88, %s89
      %p93 = pneg %p87
      %p94 = scmp.eq.s32.totalorder %s15, 1
      %p95 = por %p93, %p94
      %p96 = scmp.ne.s32.totalorder %s88, %s91
      %p97 = scmp.eq.s32.totalorder %s15, 0
      %p98 = por %p96, %p97
      %p99 = scmp.ne.s32.totalorder %s88, %s91
      %p100 = scmp.eq.s32.totalorder %s20, 1
      %p101 = por %p99, %p100
      %p102 = scmp.ne.s32.totalorder %s91, %s92
      %p103 = scmp.eq.s32.totalorder %s20, 0
      %p104 = por %p102, %p103
      %p105 = scmp.ne.s32.totalorder %s91, %s92
      %p106 = scmp.eq.s32.totalorder %s21, 1
      %p107 = por %p105, %p106
      %p109 = scmp.ne.s32.totalorder %s92, %s108
      %p110 = scmp.eq.s32.totalorder %s21, 0
      %p111 = por %p109, %p110
      %p112 = scmp.le.s32.totalorder 1, %s15
      %p113 = scmp.lt.s32.totalorder %s15, 3
      %p114 = pnand %p112, %p113
      %p115 = pneg %p114
      // Predicated region
      $region9: #{tpu_custom_call.1} parent=5 // pred_check
        _
      $region10: #{tpu_custom_call.1} parent=5 // pred_check_branch
        %117 = sbr.rel (%p114) target = $region12
      $region11: #{tpu_custom_call.1} parent=5 // pred_region
        %s118 = ssub.s32 %s15, 1
        // Predicated region
        $region13: #{tpu_custom_call.1} parent=11 // pred_check
          %p119 = pneg %p48
        $region14: #{tpu_custom_call.1} parent=11 // pred_check_branch
          %121 = sbr.rel (%p119) target = $region16
        $region15: #{tpu_custom_call.1} parent=11 // pred_region
          %123 = vsyncadd [#allocation5], 0
          %s125 = sshll.u32 %s0, 4
          %s126 = int_to_ptr.hbm [resolvable:$true] %s125
          %128 = dma.hbm_to_smem %s126, 16, [#allocation2], [#allocation5]
        $region16: #{tpu_custom_call.1} parent=11 // pred_fallthru
          _
      $region12: #{tpu_custom_call.1} parent=5 // pred_fallthru
        _
      %p129 = scmp.lt.s32.totalorder %s15, 2
      // Predicated region
      $region17: #{tpu_custom_call.1} parent=5 // pred_check
        %p130 = pneg %p129
      $region18: #{tpu_custom_call.1} parent=5 // pred_check_branch
        %132 = sbr.rel (%p130) target = $region20
      $region19: #{tpu_custom_call.1} parent=5 // pred_region
        // Predicated region
        $region21: #{tpu_custom_call.1} parent=19 // pred_check
          %p133 = pneg %p70
        $region22: #{tpu_custom_call.1} parent=19 // pred_check_branch
          %135 = sbr.rel (%p133) target = $region24
        $region23: #{tpu_custom_call.1} parent=19 // pred_region
          %s136 = sand.u32 %s60, 1
          %s137 = scalar_lea.sflag [#allocation3], %s136
          %s138 = sand.u32 %s60, 1
          %s139 = smul.addr %s138, 4
          %s140 = scalar_lea.vmem [#allocation6], %s139
          %142 = vsyncadd %s137, 0
          %s143 = sadd.s32 %s23, %s22
          %s144 = smul.addr %s143, 4
          %s145 = scalar_lea.hbm %s1, %s144
          %s147 = sshll.u32 %s145, 4
          %s148 = int_to_ptr.hbm [resolvable:$true] %s147
          %s149 = sshll.u32 %s140, 4
          %s150 = int_to_ptr.vmem [resolvable:$true] %s149
          %152 = dma.hbm_to_vmem [thread:$0]  %s148, 64, %s150, %s137
        $region24: #{tpu_custom_call.1} parent=19 // pred_fallthru
          _
      $region20: #{tpu_custom_call.1} parent=5 // pred_fallthru
        _
      %p153 = scmp.le.s32.totalorder 1, %s15
      %p154 = scmp.lt.s32.totalorder %s15, 3
      %p155 = pnand %p153, %p154
      %p156 = pneg %p155
      // Predicated region
      $region25: #{tpu_custom_call.1} parent=5 // pred_check
        _
      $region26: #{tpu_custom_call.1} parent=5 // pred_check_branch
        %158 = sbr.rel (%p155) target = $region28
      $region27: #{tpu_custom_call.1} parent=5 // pred_region
        %s159 = ssub.s32 %s15, 1
        // Predicated region
        $region29: #{tpu_custom_call.1} parent=27 // pred_check
          %p160 = pneg %p48
        $region30: #{tpu_custom_call.1} parent=27 // pred_check_branch
          %162 = sbr.rel (%p160) target = $region32
        $region31: #{tpu_custom_call.1} parent=27 // pred_region
          %164 = dma.done [#allocation5], 16
        $region32: #{tpu_custom_call.1} parent=27 // pred_fallthru
          _
        %s165 = sand.u32 %s63, 1
        %s166 = scalar_lea.sflag [#allocation3], %s165
        %s167 = sand.u32 %s63, 1
        %s168 = smul.addr %s167, 4
        %s169 = scalar_lea.vmem [#allocation6], %s168
        // Predicated region
        $region33: #{tpu_custom_call.1} parent=27 // pred_check
          %p170 = pneg %p76
        $region34: #{tpu_custom_call.1} parent=27 // pred_check_branch
          %172 = sbr.rel (%p170) target = $region36
        $region35: #{tpu_custom_call.1} parent=27 // pred_region
          %174 = dma.done %s166, 64
        $region36: #{tpu_custom_call.1} parent=27 // pred_fallthru
          _
        %175 = sfence
        %p176 = pneg %p48
        %p177 = pneg %p45
        %s178 = sand.u32 %s63, 1
        %s179 = scalar_lea.sflag [#allocation3], %s178
        %s180 = sand.u32 %s63, 1
        %s181 = smul.addr %s180, 4
        %s182 = scalar_lea.vmem [#allocation6], %s181
        %p183 = pneg %p76
        %p184 = pneg %p73
        %p185 = pneg %p104
        %p186 = pneg %p101
        %s187 = sand.u32 %s91, 1
        %s188 = scalar_lea.sflag [#allocation4], %s187
        %s189 = sand.u32 %s91, 1
        %s190 = smul.addr %s189, 4
        %s191 = scalar_lea.vmem [#allocation7], %s190
        %v192 = vld [vmem:[%s169] sm:$0xf]
        %vm193 = vcmask 1043456
        %v194 = vsel %vm193, %v192, 0.0
        %v195 = vrot.slane %v194, 4
        %v196 = vadd.f32 %v194, %v195
        %v197 = vrot.slane %v196, 2
        %v198 = vadd.f32 %v196, %v197
        %v199 = vrot.slane %v198, 1
        %v200 = vadd.f32 %v198, %v199
        %v201 = vsel %vm193, %v192, -inf
        %v202 = vrot.slane %v201, 4
        %v203 = vmax.f32 %v201, %v202
        %v204 = vrot.slane %v203, 2
        %v205 = vmax.f32 %v203, %v204
        %v206 = vrot.slane %v205, 1
        %v207 = vmax.f32 %v205, %v206
        %s208 = sld [smem:[#allocation2]]
        %v209 = vstv %s208
        %v210 = vmul.f32 %v209, %v207
        %s211 = sld [smem:[#allocation2 + $0x1]]
        %v212 = vstv %s211
        %v213 = vmul.f32 %v212, %v200
        %v214 = vadd.f32 %v210, %v213
        %s215 = sld [smem:[#allocation2 + $0x2]]
        %v216 = vstv %s215
        %v217 = vadd.f32 %v214, %v216
        %v218 = vmax.f32 %v217, 0.0
        %v219 = vxor.u32 %v218, 2147483648
        %v220 = vmul.f32 %v219, 1.442695
        %v221 = vpow.pop %v220
        %v222 = vadd.f32 %v221, 1.0
        %v223 = vrcp.pop %v222
        %v224 = vmul.f32 %v222, %v223
        %v225 = vsub.f32 1.0, %v224
        %v226 = vmul.f32 %v223, %v225
        %v227 = vadd.f32 %v223, %v226
        %vm228 = vweird.f32 %v222
        %vm229 = vweird.f32 %v223
        %vm230 = vmor %vm228, %vm229
        %v231 = vsel %vm230, %v223, %v227
        %v232 = vand.u32 2147483647, %v222
        %vm233 = vcmp.eq.f32.partialorder %v232, 8.507059e+37
        %v234 = vand.u32 %v222, 2147483648
        %v235 = vor.u32 1.1754944e-38, %v234
        %v236 = vsel %vm233, %v235, %v231
        %v237 = vmul.f32 1.0, %v236
        %v238 = vmul.f32 %v237, %v192
        %239 = vst [vmem:[%s191] sm:$0xf] %v238
        %s240 = sand.u32 %s91, 1
        %s241 = scalar_lea.sflag [#allocation4], %s240
        %s242 = sand.u32 %s91, 1
        %s243 = smul.addr %s242, 4
        %s244 = scalar_lea.vmem [#allocation7], %s243
        // Predicated region
        $region37: #{tpu_custom_call.1} parent=27 // pred_check
          %p245 = pneg %p101
        $region38: #{tpu_custom_call.1} parent=27 // pred_check_branch
          %247 = sbr.rel (%p245) target = $region40
        $region39: #{tpu_custom_call.1} parent=27 // pred_region
          %249 = vsyncadd %s241, 0
          %s250 = sadd.s32 %s25, %s24
          %s251 = smul.addr %s250, 4
          %s252 = scalar_lea.hbm %s2, %s251
          %s254 = sshll.u32 %s244, 4
          %s255 = int_to_ptr.vmem [resolvable:$true] %s254
          %s256 = sshll.u32 %s252, 4
          %s257 = int_to_ptr.hbm [resolvable:$true] %s256
          %259 = dma.vmem_to_hbm [thread:$0]  %s255, 64, %s257, %s241
        $region40: #{tpu_custom_call.1} parent=27 // pred_fallthru
          _
      $region28: #{tpu_custom_call.1} parent=5 // pred_fallthru
        _
      %p260 = scmp.le.s32.totalorder 2, %s15
      // Predicated region
      $region41: #{tpu_custom_call.1} parent=5 // pred_check
        %p261 = pneg %p260
      $region42: #{tpu_custom_call.1} parent=5 // pred_check_branch
        %263 = sbr.rel (%p261) target = $region44
      $region43: #{tpu_custom_call.1} parent=5 // pred_region
        %s264 = ssub.s32 %s15, 2
        // Predicated region
        $region45: #{tpu_custom_call.1} parent=43 // pred_check
          %p265 = pneg %p107
        $region46: #{tpu_custom_call.1} parent=43 // pred_check_branch
          %267 = sbr.rel (%p265) target = $region48
        $region47: #{tpu_custom_call.1} parent=43 // pred_region
          %s268 = sand.u32 %s92, 1
          %s269 = scalar_lea.sflag [#allocation4], %s268
          %s270 = sand.u32 %s92, 1
          %s271 = smul.addr %s270, 4
          %s272 = scalar_lea.vmem [#allocation7], %s271
          %274 = dma.done %s269, 64
        $region48: #{tpu_custom_call.1} parent=43 // pred_fallthru
          _
      $region44: #{tpu_custom_call.1} parent=5 // pred_fallthru
        _
    $region6: #{tpu_custom_call.1} parent=1 // loop_footer
      %s19 = sadd.s32 1, %s15
    $region7: #{tpu_custom_call.1} parent=1 // loop_footer_branch
      %14 = sbr.rel target = $region3
    $region8: #{tpu_custom_call.1} parent=1 // loop_exit
      _
    %275 = vsyncpa [#allocation3], 1
    %s276 = scalar_lea.sflag [#allocation3], 1
    %277 = vsyncpa %s276, 1
    %278 = vsyncpa [#allocation4], 1
    %s279 = scalar_lea.sflag [#allocation4], 1
    %280 = vsyncpa %s279, 1
    %281 = vsyncpa [#allocation5], 1
    %s282 = scalar_lea.sflag [#allocation5], 1
    %283 = vsyncpa %s282, 1

</llo_original>
